<compile_context>
chip_gen: v6e
topology: v6e:2x2x1
jax: 0.10.0
libtpu: 0.0.40
codegen_flags: <defaults>
</compile_context>

<pallas_src>
import jax
import jax.numpy as jnp
import numpy as np
from jax.experimental import pallas as pl
from jax.experimental.pallas import tpu as pltpu


def fft_attn_kernel(xre_ref, xim_ref, hi_ref, w1_ref, b1_ref, w2_ref, b2_ref,
                    ore_ref, oim_ref):
    xre = xre_ref[...]                     # (TN, C, H*W) f32: Re(fft2(x))
    xim = xim_ref[...]                     # (TN, C, H*W) f32: Im(fft2(x))
    hi = hi_ref[...][None]                 # (1, 1, H*W): 1.0 inside high-freq corner

    # Channel attention: masked avg-pool (1/count folded into w1) -> fc1 -> relu
    # -> fc2 -> sigmoid.  The matmuls are tiny matrix-vector products, so they run
    # as VPU broadcast-multiplies + XLU lane reductions instead of the MXU.
    mag = jnp.sqrt(xre * xre + xim * xim)                                # (TN, C, HW)
    s = jnp.sum(mag * hi, axis=-1)                                       # (TN, C)
    hidden = jnp.sum(w1_ref[...][None] * s[:, None, :], axis=-1) + b1_ref[...]   # (TN, R)
    hidden = jnp.maximum(hidden, 0.0)
    y = jax.nn.sigmoid(
        jnp.sum(w2_ref[...][None] * hidden[:, None, :], axis=-1) + b2_ref[...])  # (TN, C)

    # scale == y inside the high-freq corner, 1 elsewhere (pass-through).
    scale = 1.0 + hi * (y[:, :, None] - 1.0)                             # (TN, C, HW)
    ore_ref[...] = xre * scale
    oim_ref[...] = xim * scale


@jax.jit
def fft_layer(x, w1, b1, w2, b2):
    """Pallas-accelerated equivalent of FftLayer(in_channels).forward(x) (NCHW input)."""
    N, C, H, W = x.shape
    R = w1.shape[0]
    # Shifted quadrant Xs[..., H//2:, W//2:] == unshifted corner [0:qh, 0:qw].
    qh, qw = H - H // 2, W - W // 2

    # FFT front/back ends stay at the XLA level (complex dtype, no Pallas FFT).
    X = jnp.fft.fft2(x, norm="ortho")
    xre = jnp.real(X).reshape(N, C, H * W)
    xim = jnp.imag(X).reshape(N, C, H * W)

    # High-frequency-corner mask, built once as a compile-time constant.
    row = np.arange(H)[:, None]
    col = np.arange(W)[None, :]
    hi_mask = jnp.asarray(((row < qh) & (col < qw)).astype(np.float32).reshape(1, H * W))

    # Fold the avg-pool 1/count into fc1's weight so the kernel only does a masked sum.
    w1s = (w1 * (1.0 / float(qh * qw))).astype(jnp.float32)
    b1r = jnp.asarray(b1, jnp.float32).reshape(1, R)
    b2r = jnp.asarray(b2, jnp.float32).reshape(1, C)
    w2f = jnp.asarray(w2, jnp.float32)

    # Batch tile: big enough to amortize per-step overhead (~1 MiB/plane target),
    # small enough to stay well below the scoped-VMEM limit (v7x: 64 MiB, 32 MiB
    # scoped), and keeping >= 2 grid steps when possible so v7x's two TensorCores
    # both get work.
    plane_bytes_per_n = C * H * W * 4
    tn = min(N, max(1, (1 << 20) // max(plane_bytes_per_n, 1)))
    if N >= 2:
        tn = min(tn, max(1, N // 2))
    while N % tn:
        tn -= 1

    plane_spec = pl.BlockSpec((tn, C, H * W), lambda n: (n, 0, 0))

    def full(shape):
        return pl.BlockSpec(shape, lambda n: (0,) * len(shape))

    block_bytes = 4 * tn * plane_bytes_per_n            # 2 in + 2 out planes / step
    vmem_limit = int(min(64 << 20, max(32 << 20, 4 * block_bytes)))

    ore, oim = pl.pallas_call(
        fft_attn_kernel,
        out_shape=(jax.ShapeDtypeStruct((N, C, H * W), jnp.float32),
                   jax.ShapeDtypeStruct((N, C, H * W), jnp.float32)),
        grid=(N // tn,),
        in_specs=[plane_spec, plane_spec,
                  full((1, H * W)),
                  full((R, C)), full((1, R)),
                  full((C, R)), full((1, C))],
        out_specs=(plane_spec, plane_spec),
        input_output_aliases={0: 0, 1: 1},   # spectrum planes are dead after the kernel
        compiler_params=pltpu.CompilerParams(
            dimension_semantics=("parallel",),
            vmem_limit_bytes=vmem_limit),
    )(xre, xim, hi_mask, w1s, b1r, w2f, b2r)

    Ys = jax.lax.complex(ore, oim).reshape(N, C, H, W)
    return jnp.fft.ifft2(Ys, norm="ortho")     # no ifftshift needed (never shifted)


def fft_layer_reference(x, w1, b1, w2, b2):
    """Pure-JAX reference with the original (shifted) formulation."""
    N, C, H, W = x.shape
    ch, cw = H // 2, W // 2
    Xs = jnp.fft.fftshift(jnp.fft.fft2(x, norm="ortho"), axes=(-2, -1))
    high = Xs[..., ch:, cw:]
    s = jnp.mean(jnp.abs(high), axis=(-2, -1))                                   # (N, C)
    hidden = jnp.maximum(
        jnp.dot(s, w1.T, precision=jax.lax.Precision.HIGHEST) + b1, 0.0)         # (N, R)
    y = jax.nn.sigmoid(
        jnp.dot(hidden, w2.T, precision=jax.lax.Precision.HIGHEST) + b2)         # (N, C)
    Ys = Xs.at[..., ch:, cw:].set(high * y[:, :, None, None])
    return jnp.fft.ifft2(jnp.fft.ifftshift(Ys, axes=(-2, -1)), norm="ortho")


if __name__ == "__main__":
    key = jax.random.PRNGKey(0)
    N, C, H, W = 2, 32, 16, 16          # in_channels=32 -> attention hidden = 32 // 16 = 2
    reduction = 16
    assert C % reduction == 0
    R = C // reduction

    k_x, k_w1, k_b1, k_w2, k_b2 = jax.random.split(key, 5)
    x = jax.random.normal(k_x, (N, C, H, W), dtype=jnp.float32)
    # The PyTorch module builds sly_ChannelAttentionBlock(in_channels) with fresh random
    # weights inside forward(); here deterministic weights are built once up front.
    w1 = jax.random.normal(k_w1, (R, C), dtype=jnp.float32) / float(np.sqrt(C))   # fc1.weight
    b1 = jax.random.normal(k_b1, (R,), dtype=jnp.float32) * 0.1                   # fc1.bias
    w2 = jax.random.normal(k_w2, (C, R), dtype=jnp.float32) / float(np.sqrt(R))   # fc2.weight
    b2 = jax.random.normal(k_b2, (C,), dtype=jnp.float32) * 0.1                   # fc2.bias

    out = jax.block_until_ready(fft_layer(x, w1, b1, w2, b2))
    ref = jax.block_until_ready(fft_layer_reference(x, w1, b1, w2, b2))

    assert out.shape == (N, C, H, W), out.shape
    assert out.dtype == jnp.complex64, out.dtype
    np.testing.assert_allclose(np.asarray(out), np.asarray(ref), rtol=1e-4, atol=1e-4)

    print("KERNEL_OK")
</pallas_src>

<mosaic_0001>
module attributes {stable_mosaic.version = 11 : i64} {
  func.func @fft_attn_kernel(%arg0: i32, %arg1: memref<1x32x256xf32, #tpu.memory_space<vmem>>, %arg2: memref<1x32x256xf32, #tpu.memory_space<vmem>>, %arg3: memref<1x256xf32, #tpu.memory_space<vmem>>, %arg4: memref<2x32xf32, #tpu.memory_space<vmem>>, %arg5: memref<1x2xf32, #tpu.memory_space<vmem>>, %arg6: memref<32x2xf32, #tpu.memory_space<vmem>>, %arg7: memref<1x32xf32, #tpu.memory_space<vmem>>, %arg8: memref<1x32x256xf32, #tpu.memory_space<vmem>>, %arg9: memref<1x32x256xf32, #tpu.memory_space<vmem>>) attributes {dimension_semantics = [#tpu.dimension_semantics<parallel>], iteration_bounds = array<i64: 2>, scalar_prefetch = 0 : i64, scratch_operands = 0 : i64, tpu.core_type = #tpu.core_type<tc>, window_params = [{transform_indices = @transform_0, window_bounds = array<i64: 1, 32, 256>}, {transform_indices = @transform_1, window_bounds = array<i64: 1, 32, 256>}, {pipeline_mode = #tpu.pipeline_mode<synchronous>, transform_indices = @transform_2, window_bounds = array<i64: 1, 256>}, {pipeline_mode = #tpu.pipeline_mode<synchronous>, transform_indices = @transform_3, window_bounds = array<i64: 2, 32>}, {pipeline_mode = #tpu.pipeline_mode<synchronous>, transform_indices = @transform_4, window_bounds = array<i64: 1, 2>}, {pipeline_mode = #tpu.pipeline_mode<synchronous>, transform_indices = @transform_5, window_bounds = array<i64: 32, 2>}, {pipeline_mode = #tpu.pipeline_mode<synchronous>, transform_indices = @transform_6, window_bounds = array<i64: 1, 32>}, {transform_indices = @transform_7, window_bounds = array<i64: 1, 32, 256>}, {transform_indices = @transform_8, window_bounds = array<i64: 1, 32, 256>}]} {
    %c0 = arith.constant 0 : index
    %c0_0 = arith.constant 0 : index
    %c0_1 = arith.constant 0 : index
    %0 = vector.load %arg1[%c0, %c0_0, %c0_1] : memref<1x32x256xf32, #tpu.memory_space<vmem>>, vector<1x32x256xf32>
    %c0_2 = arith.constant 0 : index
    %c0_3 = arith.constant 0 : index
    %c0_4 = arith.constant 0 : index
    %1 = vector.load %arg2[%c0_2, %c0_3, %c0_4] : memref<1x32x256xf32, #tpu.memory_space<vmem>>, vector<1x32x256xf32>
    %c0_5 = arith.constant 0 : index
    %c0_6 = arith.constant 0 : index
    %2 = vector.load %arg3[%c0_5, %c0_6] : memref<1x256xf32, #tpu.memory_space<vmem>>, vector<1x256xf32>
    %3 = vector.shape_cast %2 : vector<1x256xf32> to vector<1x1x256xf32>
    %4 = arith.mulf %0, %0 : vector<1x32x256xf32>
    %5 = arith.mulf %1, %1 : vector<1x32x256xf32>
    %6 = arith.addf %4, %5 : vector<1x32x256xf32>
    %7 = math.sqrt %6 : vector<1x32x256xf32>
    %8 = vector.broadcast %3 : vector<1x1x256xf32> to vector<1x32x256xf32>
    %9 = arith.mulf %7, %8 : vector<1x32x256xf32>
    %cst = arith.constant dense<0.000000e+00> : vector<1x32xf32>
    %10 = vector.multi_reduction <add>, %9, %cst [2] : vector<1x32x256xf32> to vector<1x32xf32>
    %c0_7 = arith.constant 0 : index
    %c0_8 = arith.constant 0 : index
    %11 = vector.load %arg4[%c0_7, %c0_8] : memref<2x32xf32, #tpu.memory_space<vmem>>, vector<2x32xf32>
    %12 = vector.shape_cast %11 : vector<2x32xf32> to vector<1x2x32xf32>
    %13 = vector.shape_cast %10 : vector<1x32xf32> to vector<1x1x32xf32>
    %14 = vector.broadcast %13 : vector<1x1x32xf32> to vector<1x2x32xf32>
    %15 = arith.mulf %12, %14 : vector<1x2x32xf32>
    %cst_9 = arith.constant dense<0.000000e+00> : vector<1x2xf32>
    %16 = vector.multi_reduction <add>, %15, %cst_9 [2] : vector<1x2x32xf32> to vector<1x2xf32>
    %c0_10 = arith.constant 0 : index
    %c0_11 = arith.constant 0 : index
    %17 = vector.load %arg5[%c0_10, %c0_11] : memref<1x2xf32, #tpu.memory_space<vmem>>, vector<1x2xf32>
    %18 = arith.addf %16, %17 : vector<1x2xf32>
    %cst_12 = arith.constant 0.000000e+00 : f32
    %19 = vector.broadcast %cst_12 : f32 to vector<1x2xf32>
    %20 = arith.maximumf %18, %19 : vector<1x2xf32>
    %c0_13 = arith.constant 0 : index
    %c0_14 = arith.constant 0 : index
    %21 = vector.load %arg6[%c0_13, %c0_14] : memref<32x2xf32, #tpu.memory_space<vmem>>, vector<32x2xf32>
    %22 = vector.shape_cast %21 : vector<32x2xf32> to vector<1x32x2xf32>
    %23 = vector.shape_cast %20 : vector<1x2xf32> to vector<1x1x2xf32>
    %24 = vector.broadcast %23 : vector<1x1x2xf32> to vector<1x32x2xf32>
    %25 = arith.mulf %22, %24 : vector<1x32x2xf32>
    %cst_15 = arith.constant dense<0.000000e+00> : vector<1x32xf32>
    %26 = vector.multi_reduction <add>, %25, %cst_15 [2] : vector<1x32x2xf32> to vector<1x32xf32>
    %c0_16 = arith.constant 0 : index
    %c0_17 = arith.constant 0 : index
    %27 = vector.load %arg7[%c0_16, %c0_17] : memref<1x32xf32, #tpu.memory_space<vmem>>, vector<1x32xf32>
    %28 = arith.addf %26, %27 : vector<1x32xf32>
    %29 = arith.negf %28 : vector<1x32xf32>
    %30 = math.exp %29 : vector<1x32xf32>
    %cst_18 = arith.constant 1.000000e+00 : f32
    %31 = vector.broadcast %cst_18 : f32 to vector<1x32xf32>
    %32 = arith.addf %31, %30 : vector<1x32xf32>
    %33 = arith.divf %31, %32 : vector<1x32xf32>
    %34 = vector.shape_cast %33 : vector<1x32xf32> to vector<1x32x1xf32>
    %cst_19 = arith.constant 1.000000e+00 : f32
    %35 = vector.broadcast %cst_19 : f32 to vector<1x32x1xf32>
    %36 = arith.subf %34, %35 : vector<1x32x1xf32>
    %37 = vector.broadcast %3 : vector<1x1x256xf32> to vector<1x32x256xf32>
    %38 = vector.broadcast %36 : vector<1x32x1xf32> to vector<1x32x256xf32>
    %39 = arith.mulf %37, %38 : vector<1x32x256xf32>
    %cst_20 = arith.constant 1.000000e+00 : f32
    %40 = vector.broadcast %cst_20 : f32 to vector<1x32x256xf32>
    %41 = arith.addf %40, %39 : vector<1x32x256xf32>
    %42 = arith.mulf %0, %41 : vector<1x32x256xf32>
    %c0_21 = arith.constant 0 : index
    %c0_22 = arith.constant 0 : index
    %c0_23 = arith.constant 0 : index
    %43 = vector.load %arg8[%c0_21, %c0_22, %c0_23] : memref<1x32x256xf32, #tpu.memory_space<vmem>>, vector<1x32x256xf32>
    tpu.vector_store %arg8[%c0_21, %c0_22, %c0_23], %42 {strides = array<i32>} : memref<1x32x256xf32, #tpu.memory_space<vmem>>, vector<1x32x256xf32>,
    %44 = arith.mulf %1, %41 : vector<1x32x256xf32>
    %c0_24 = arith.constant 0 : index
    %c0_25 = arith.constant 0 : index
    %c0_26 = arith.constant 0 : index
    %45 = vector.load %arg9[%c0_24, %c0_25, %c0_26] : memref<1x32x256xf32, #tpu.memory_space<vmem>>, vector<1x32x256xf32>
    tpu.vector_store %arg9[%c0_24, %c0_25, %c0_26], %44 {strides = array<i32>} : memref<1x32x256xf32, #tpu.memory_space<vmem>>, vector<1x32x256xf32>,
    return
  }
  func.func @transform_0(%arg0: i32) -> (i32, i32, i32) {
    %c0_i32 = arith.constant 0 : i32
    %c0_i32_0 = arith.constant 0 : i32
    %c0_i32_1 = arith.constant 0 : i32
    return %arg0, %c0_i32, %c0_i32_0 : i32, i32, i32
  }
  func.func @transform_1(%arg0: i32) -> (i32, i32, i32) {
    %c0_i32 = arith.constant 0 : i32
    %c0_i32_0 = arith.constant 0 : i32
    %c0_i32_1 = arith.constant 0 : i32
    return %arg0, %c0_i32, %c0_i32_0 : i32, i32, i32
  }
  func.func @transform_2(%arg0: i32) -> (i32, i32) {
    %c0_i32 = arith.constant 0 : i32
    %c0_i32_0 = arith.constant 0 : i32
    %c0_i32_1 = arith.constant 0 : i32
    return %c0_i32, %c0_i32_0 : i32, i32
  }
  func.func @transform_3(%arg0: i32) -> (i32, i32) {
    %c0_i32 = arith.constant 0 : i32
    %c0_i32_0 = arith.constant 0 : i32
    %c0_i32_1 = arith.constant 0 : i32
    return %c0_i32, %c0_i32_0 : i32, i32
  }
  func.func @transform_4(%arg0: i32) -> (i32, i32) {
    %c0_i32 = arith.constant 0 : i32
    %c0_i32_0 = arith.constant 0 : i32
    %c0_i32_1 = arith.constant 0 : i32
    return %c0_i32, %c0_i32_0 : i32, i32
  }
  func.func @transform_5(%arg0: i32) -> (i32, i32) {
    %c0_i32 = arith.constant 0 : i32
    %c0_i32_0 = arith.constant 0 : i32
    %c0_i32_1 = arith.constant 0 : i32
    return %c0_i32, %c0_i32_0 : i32, i32
  }
  func.func @transform_6(%arg0: i32) -> (i32, i32) {
    %c0_i32 = arith.constant 0 : i32
    %c0_i32_0 = arith.constant 0 : i32
    %c0_i32_1 = arith.constant 0 : i32
    return %c0_i32, %c0_i32_0 : i32, i32
  }
  func.func @transform_7(%arg0: i32) -> (i32, i32, i32) {
    %c0_i32 = arith.constant 0 : i32
    %c0_i32_0 = arith.constant 0 : i32
    %c0_i32_1 = arith.constant 0 : i32
    return %arg0, %c0_i32, %c0_i32_0 : i32, i32, i32
  }
  func.func @transform_8(%arg0: i32) -> (i32, i32, i32) {
    %c0_i32 = arith.constant 0 : i32
    %c0_i32_0 = arith.constant 0 : i32
    %c0_i32_1 = arith.constant 0 : i32
    return %arg0, %c0_i32, %c0_i32_0 : i32, i32, i32
  }
}

</mosaic_0001>

<llo_original>
// kernel: fft_layer.1
$region0: #{fft_layer.1}
  #allocation0 [shape = 'u32[]', space=smem, size = 0x4, offset = 0x4, fixed_abs, tag = 'smem constant byte address 0x4 - core index']
  #allocation1 [shape = 'u32[144,128]{1,0:T(1,128)}', space=vmem, size = 0x12000, scoped, tag = 'internal scratch']
  %s0 = inlined_call_operand.vmem [shape: f32[2,32,256], index: 0, kind: input, shape index: {}, may-alias: {0,7}]
  %s1 = inlined_call_operand.vmem [shape: f32[2,32,256], index: 1, kind: input, shape index: {}, may-alias: {1,8}]
  %s2 = inlined_call_operand.vmem [shape: f32[1,256], index: 2, kind: input, shape index: {}]
  %s3 = inlined_call_operand.vmem [shape: f32[2,32], index: 3, kind: input, shape index: {}]
  %s4 = inlined_call_operand.vmem [shape: f32[1,2], index: 4, kind: input, shape index: {}]
  %s5 = inlined_call_operand.vmem [shape: f32[32,2], index: 5, kind: input, shape index: {}]
  %s6 = inlined_call_operand.vmem [shape: f32[1,32], index: 6, kind: input, shape index: {}]
  %s7 = inlined_call_operand.vmem [shape: f32[2,32,256], index: 7, kind: output, shape index: {0}, may-alias: {0,7}]
  %s8 = inlined_call_operand.vmem [shape: f32[2,32,256], index: 8, kind: output, shape index: {1}, may-alias: {1,8}]
  %9 = xla_tuple %s7, %s8
  %s10 = sld [smem:[#allocation0]]
  $region69: #{fft_layer.1} parent=0
    _
  %s12 = ssub.s32 1, %s10
  %s13 = scalar_select 0, %s12, %s10
  loop: start=0, step=1, limit=4
  $region2: #{fft_layer.1} parent=0 // loop_pre_header
    _
  $region3: #{fft_layer.1} parent=0 // loop_header
    %s15 = sphi 0, %s19
    %p16 = scmp.ge.s32.totalorder %s15, 4
    %s25 = sphi 0, %s27
    %s28 = sphi 0, %s25
    %s29 = sphi 0, %s28
    %s45 = sphi 0, %s29
    %s51 = sphi 0, %s53
    %s54 = sphi 0, %s51
    %s55 = sphi 0, %s54
    %s71 = sphi 0, %s55
    %s75 = sphi 0, %s75
    %s77 = sphi 0, %s75
    %s78 = sphi 0, %s77
    %s92 = sphi 0, %s78
    %s96 = sphi 0, %s96
    %s98 = sphi 0, %s96
    %s99 = sphi 0, %s98
    %s113 = sphi 0, %s99
    %s117 = sphi 0, %s117
    %s119 = sphi 0, %s117
    %s120 = sphi 0, %s119
    %s134 = sphi 0, %s120
    %s138 = sphi 0, %s138
    %s140 = sphi 0, %s138
    %s141 = sphi 0, %s140
    %s155 = sphi 0, %s141
    %s159 = sphi 0, %s159
    %s161 = sphi 0, %s159
    %s162 = sphi 0, %s161
    %s176 = sphi 0, %s162
    %s182 = sphi 0, %s184
    %s185 = sphi 0, %s182
    %s186 = sphi 0, %s185
    %s202 = sphi 0, %s186
    %s208 = sphi 0, %s210
    %s211 = sphi 0, %s208
    %s212 = sphi 0, %s211
    %s228 = sphi 0, %s212
  $region4: #{fft_layer.1} parent=0 // loop_header_branch
    %18 = sbr.rel (%p16) target = $region8
  $region5: #{fft_layer.1} parent=0 // loop_body
    %s20 = ssub.s32 %s15, 1
    %s21 = ssub.s32 %s15, 2
    %s22 = sadd.s32 %s15, 1
    %s23 = ssub.s32 %s15, %s22
    %p24 = scmp.eq.s32.totalorder %s23, 0
    %s26 = sadd.s32 %s25, 1
    %s27 = scalar_select %p24, %s25, %s26
    %p30 = pneg %p24
    %p31 = scmp.eq.s32.totalorder %s15, 1
    %p32 = por %p30, %p31
    %p33 = scmp.ne.s32.totalorder %s25, %s28
    %p34 = scmp.eq.s32.totalorder %s15, 0
    %p35 = por %p33, %p34
    %p36 = scmp.ne.s32.totalorder %s25, %s28
    %p37 = scmp.eq.s32.totalorder %s20, 1
    %p38 = por %p36, %p37
    %p39 = scmp.ne.s32.totalorder %s28, %s29
    %p40 = scmp.eq.s32.totalorder %s20, 0
    %p41 = por %p39, %p40
    %p42 = scmp.ne.s32.totalorder %s28, %s29
    %p43 = scmp.eq.s32.totalorder %s21, 1
    %p44 = por %p42, %p43
    %p46 = scmp.ne.s32.totalorder %s29, %s45
    %p47 = scmp.eq.s32.totalorder %s21, 0
    %p48 = por %p46, %p47
    %s49 = ssub.s32 %s15, %s22
    %p50 = scmp.eq.s32.totalorder %s49, 0
    %s52 = sadd.s32 %s51, 1
    %s53 = scalar_select %p50, %s51, %s52
    %p56 = pneg %p50
    %p57 = scmp.eq.s32.totalorder %s15, 1
    %p58 = por %p56, %p57
    %p59 = scmp.ne.s32.totalorder %s51, %s54
    %p60 = scmp.eq.s32.totalorder %s15, 0
    %p61 = por %p59, %p60
    %p62 = scmp.ne.s32.totalorder %s51, %s54
    %p63 = scmp.eq.s32.totalorder %s20, 1
    %p64 = por %p62, %p63
    %p65 = scmp.ne.s32.totalorder %s54, %s55
    %p66 = scmp.eq.s32.totalorder %s20, 0
    %p67 = por %p65, %p66
    %p68 = scmp.ne.s32.totalorder %s54, %s55
    %p69 = scmp.eq.s32.totalorder %s21, 1
    %p70 = por %p68, %p69
    %p72 = scmp.ne.s32.totalorder %s55, %s71
    %p73 = scmp.eq.s32.totalorder %s21, 0
    %p74 = por %p72, %p73
    %s76 = sadd.s32 %s75, 1
    %p79 = scmp.eq.s32.totalorder %s15, 1
    %p80 = scmp.ne.s32.totalorder %s75, %s77
    %p81 = scmp.eq.s32.totalorder %s15, 0
    %p82 = por %p80, %p81
    %p83 = scmp.ne.s32.totalorder %s75, %s77
    %p84 = scmp.eq.s32.totalorder %s20, 1
    %p85 = por %p83, %p84
    %p86 = scmp.ne.s32.totalorder %s77, %s78
    %p87 = scmp.eq.s32.totalorder %s20, 0
    %p88 = por %p86, %p87
    %p89 = scmp.ne.s32.totalorder %s77, %s78
    %p90 = scmp.eq.s32.totalorder %s21, 1
    %p91 = por %p89, %p90
    %p93 = scmp.ne.s32.totalorder %s78, %s92
    %p94 = scmp.eq.s32.totalorder %s21, 0
    %p95 = por %p93, %p94
    %s97 = sadd.s32 %s96, 1
    %p100 = scmp.eq.s32.totalorder %s15, 1
    %p101 = scmp.ne.s32.totalorder %s96, %s98
    %p102 = scmp.eq.s32.totalorder %s15, 0
    %p103 = por %p101, %p102
    %p104 = scmp.ne.s32.totalorder %s96, %s98
    %p105 = scmp.eq.s32.totalorder %s20, 1
    %p106 = por %p104, %p105
    %p107 = scmp.ne.s32.totalorder %s98, %s99
    %p108 = scmp.eq.s32.totalorder %s20, 0
    %p109 = por %p107, %p108
    %p110 = scmp.ne.s32.totalorder %s98, %s99
    %p111 = scmp.eq.s32.totalorder %s21, 1
    %p112 = por %p110, %p111
    %p114 = scmp.ne.s32.totalorder %s99, %s113
    %p115 = scmp.eq.s32.totalorder %s21, 0
    %p116 = por %p114, %p115
    %s118 = sadd.s32 %s117, 1
    %p121 = scmp.eq.s32.totalorder %s15, 1
    %p122 = scmp.ne.s32.totalorder %s117, %s119
    %p123 = scmp.eq.s32.totalorder %s15, 0
    %p124 = por %p122, %p123
    %p125 = scmp.ne.s32.totalorder %s117, %s119
    %p126 = scmp.eq.s32.totalorder %s20, 1
    %p127 = por %p125, %p126
    %p128 = scmp.ne.s32.totalorder %s119, %s120
    %p129 = scmp.eq.s32.totalorder %s20, 0
    %p130 = por %p128, %p129
    %p131 = scmp.ne.s32.totalorder %s119, %s120
    %p132 = scmp.eq.s32.totalorder %s21, 1
    %p133 = por %p131, %p132
    %p135 = scmp.ne.s32.totalorder %s120, %s134
    %p136 = scmp.eq.s32.totalorder %s21, 0
    %p137 = por %p135, %p136
    %s139 = sadd.s32 %s138, 1
    %p142 = scmp.eq.s32.totalorder %s15, 1
    %p143 = scmp.ne.s32.totalorder %s138, %s140
    %p144 = scmp.eq.s32.totalorder %s15, 0
    %p145 = por %p143, %p144
    %p146 = scmp.ne.s32.totalorder %s138, %s140
    %p147 = scmp.eq.s32.totalorder %s20, 1
    %p148 = por %p146, %p147
    %p149 = scmp.ne.s32.totalorder %s140, %s141
    %p150 = scmp.eq.s32.totalorder %s20, 0
    %p151 = por %p149, %p150
    %p152 = scmp.ne.s32.totalorder %s140, %s141
    %p153 = scmp.eq.s32.totalorder %s21, 1
    %p154 = por %p152, %p153
    %p156 = scmp.ne.s32.totalorder %s141, %s155
    %p157 = scmp.eq.s32.totalorder %s21, 0
    %p158 = por %p156, %p157
    %s160 = sadd.s32 %s159, 1
    %p163 = scmp.eq.s32.totalorder %s15, 1
    %p164 = scmp.ne.s32.totalorder %s159, %s161
    %p165 = scmp.eq.s32.totalorder %s15, 0
    %p166 = por %p164, %p165
    %p167 = scmp.ne.s32.totalorder %s159, %s161
    %p168 = scmp.eq.s32.totalorder %s20, 1
    %p169 = por %p167, %p168
    %p170 = scmp.ne.s32.totalorder %s161, %s162
    %p171 = scmp.eq.s32.totalorder %s20, 0
    %p172 = por %p170, %p171
    %p173 = scmp.ne.s32.totalorder %s161, %s162
    %p174 = scmp.eq.s32.totalorder %s21, 1
    %p175 = por %p173, %p174
    %p177 = scmp.ne.s32.totalorder %s162, %s176
    %p178 = scmp.eq.s32.totalorder %s21, 0
    %p179 = por %p177, %p178
    %s180 = ssub.s32 %s15, %s22
    %p181 = scmp.eq.s32.totalorder %s180, 0
    %s183 = sadd.s32 %s182, 1
    %s184 = scalar_select %p181, %s182, %s183
    %p187 = pneg %p181
    %p188 = scmp.eq.s32.totalorder %s15, 1
    %p189 = por %p187, %p188
    %p190 = scmp.ne.s32.totalorder %s182, %s185
    %p191 = scmp.eq.s32.totalorder %s15, 0
    %p192 = por %p190, %p191
    %p193 = scmp.ne.s32.totalorder %s182, %s185
    %p194 = scmp.eq.s32.totalorder %s20, 1
    %p195 = por %p193, %p194
    %p196 = scmp.ne.s32.totalorder %s185, %s186
    %p197 = scmp.eq.s32.totalorder %s20, 0
    %p198 = por %p196, %p197
    %p199 = scmp.ne.s32.totalorder %s185, %s186
    %p200 = scmp.eq.s32.totalorder %s21, 1
    %p201 = por %p199, %p200
    %p203 = scmp.ne.s32.totalorder %s186, %s202
    %p204 = scmp.eq.s32.totalorder %s21, 0
    %p205 = por %p203, %p204
    %s206 = ssub.s32 %s15, %s22
    %p207 = scmp.eq.s32.totalorder %s206, 0
    %s209 = sadd.s32 %s208, 1
    %s210 = scalar_select %p207, %s208, %s209
    %p213 = pneg %p207
    %p214 = scmp.eq.s32.totalorder %s15, 1
    %p215 = por %p213, %p214
    %p216 = scmp.ne.s32.totalorder %s208, %s211
    %p217 = scmp.eq.s32.totalorder %s15, 0
    %p218 = por %p216, %p217
    %p219 = scmp.ne.s32.totalorder %s208, %s211
    %p220 = scmp.eq.s32.totalorder %s20, 1
    %p221 = por %p219, %p220
    %p222 = scmp.ne.s32.totalorder %s211, %s212
    %p223 = scmp.eq.s32.totalorder %s20, 0
    %p224 = por %p222, %p223
    %p225 = scmp.ne.s32.totalorder %s211, %s212
    %p226 = scmp.eq.s32.totalorder %s21, 1
    %p227 = por %p225, %p226
    %p229 = scmp.ne.s32.totalorder %s212, %s228
    %p230 = scmp.eq.s32.totalorder %s21, 0
    %p231 = por %p229, %p230
    %p232 = scmp.le.s32.totalorder 1, %s15
    %p233 = scmp.lt.s32.totalorder %s15, 3
    %p234 = pnand %p232, %p233
    %p235 = pneg %p234
    // Predicated region
    $region9: #{fft_layer.1} parent=5 // pred_check
      _
    $region10: #{fft_layer.1} parent=5 // pred_check_branch
      %237 = sbr.rel (%p234) target = $region12
    $region11: #{fft_layer.1} parent=5 // pred_region
      %s238 = ssub.s32 %s15, 1
      // Predicated region
      $region13: #{fft_layer.1} parent=11 // pred_check
        %p239 = pneg %p88
      $region14: #{fft_layer.1} parent=11 // pred_check_branch
        %241 = sbr.rel (%p239) target = $region16
      $region15: #{fft_layer.1} parent=11 // pred_region
        _
      $region16: #{fft_layer.1} parent=11 // pred_fallthru
        _
      // Predicated region
      $region17: #{fft_layer.1} parent=11 // pred_check
        %p242 = pneg %p109
      $region18: #{fft_layer.1} parent=11 // pred_check_branch
        %244 = sbr.rel (%p242) target = $region20
      $region19: #{fft_layer.1} parent=11 // pred_region
        _
      $region20: #{fft_layer.1} parent=11 // pred_fallthru
        _
      // Predicated region
      $region21: #{fft_layer.1} parent=11 // pred_check
        %p245 = pneg %p130
      $region22: #{fft_layer.1} parent=11 // pred_check_branch
        %247 = sbr.rel (%p245) target = $region24
      $region23: #{fft_layer.1} parent=11 // pred_region
        _
      $region24: #{fft_layer.1} parent=11 // pred_fallthru
        _
      // Predicated region
      $region25: #{fft_layer.1} parent=11 // pred_check
        %p248 = pneg %p151
      $region26: #{fft_layer.1} parent=11 // pred_check_branch
        %250 = sbr.rel (%p248) target = $region28
      $region27: #{fft_layer.1} parent=11 // pred_region
        _
      $region28: #{fft_layer.1} parent=11 // pred_fallthru
        _
      // Predicated region
      $region29: #{fft_layer.1} parent=11 // pred_check
        %p251 = pneg %p172
      $region30: #{fft_layer.1} parent=11 // pred_check_branch
        %253 = sbr.rel (%p251) target = $region32
      $region31: #{fft_layer.1} parent=11 // pred_region
        _
      $region32: #{fft_layer.1} parent=11 // pred_fallthru
        _
    $region12: #{fft_layer.1} parent=5 // pred_fallthru
      _
    %p254 = scmp.lt.s32.totalorder %s15, 2
    // Predicated region
    $region33: #{fft_layer.1} parent=5 // pred_check
      %p255 = pneg %p254
    $region34: #{fft_layer.1} parent=5 // pred_check_branch
      %257 = sbr.rel (%p255) target = $region36
    $region35: #{fft_layer.1} parent=5 // pred_region
      // Predicated region
      $region37: #{fft_layer.1} parent=35 // pred_check
        %p258 = pneg %p35
      $region38: #{fft_layer.1} parent=35 // pred_check_branch
        %260 = sbr.rel (%p258) target = $region40
      $region39: #{fft_layer.1} parent=35 // pred_region
        %p261 = scmp.lt.s32.totalorder %s15, 1
        %s262 = scalar_select %p261, %s15, 1
        %s263 = smul.addr %s262, 8
        %s264 = smul.addr %s263, 8
        %s265 = scalar_lea.vmem %s0, %s264
      $region40: #{fft_layer.1} parent=35 // pred_fallthru
        _
      // Predicated region
      $region41: #{fft_layer.1} parent=35 // pred_check
        %p266 = pneg %p61
      $region42: #{fft_layer.1} parent=35 // pred_check_branch
        %268 = sbr.rel (%p266) target = $region44
      $region43: #{fft_layer.1} parent=35 // pred_region
        %p269 = scmp.lt.s32.totalorder %s15, 1
        %s270 = scalar_select %p269, %s15, 1
        %s271 = smul.addr %s270, 8
        %s272 = smul.addr %s271, 8
        %s273 = scalar_lea.vmem %s1, %s272
      $region44: #{fft_layer.1} parent=35 // pred_fallthru
        _
    $region36: #{fft_layer.1} parent=5 // pred_fallthru
      _
    %p274 = scmp.le.s32.totalorder 1, %s15
    %p275 = scmp.lt.s32.totalorder %s15, 3
    %p276 = pnand %p274, %p275
    %p277 = pneg %p276
    // Predicated region
    $region45: #{fft_layer.1} parent=5 // pred_check
      _
    $region46: #{fft_layer.1} parent=5 // pred_check_branch
      %279 = sbr.rel (%p276) target = $region48
    $region47: #{fft_layer.1} parent=5 // pred_region
      %s280 = ssub.s32 %s15, 1
      %p281 = scmp.lt.s32.totalorder %s20, 1
      %s282 = scalar_select %p281, %s20, 1
      %s283 = smul.addr %s282, 8
      %s284 = smul.addr %s283, 8
      %s285 = scalar_lea.vmem %s0, %s284
      %p286 = pneg %p41
      %p287 = pneg %p38
      %p288 = scmp.lt.s32.totalorder %s20, 1
      %s289 = scalar_select %p288, %s20, 1
      %s290 = smul.addr %s289, 8
      %s291 = smul.addr %s290, 8
      %s292 = scalar_lea.vmem %s1, %s291
      %p293 = pneg %p67
      %p294 = pneg %p64
      %p295 = pneg %p88
      %p296 = pneg %p85
      %p297 = pneg %p109
      %p298 = pneg %p106
      %p299 = pneg %p130
      %p300 = pneg %p127
      %p301 = pneg %p151
      %p302 = pneg %p148
      %p303 = pneg %p172
      %p304 = pneg %p169
      %p305 = pneg %p198
      %p306 = pneg %p195
      %p307 = scmp.lt.s32.totalorder %s20, 1
      %s308 = scalar_select %p307, %s20, 1
      %s309 = smul.addr %s308, 8
      %s310 = smul.addr %s309, 8
      %s311 = scalar_lea.vmem %s7, %s310
      %p312 = pneg %p224
      %p313 = pneg %p221
      %p314 = scmp.lt.s32.totalorder %s20, 1
      %s315 = scalar_select %p314, %s20, 1
      %s316 = smul.addr %s315, 8
      %s317 = smul.addr %s316, 8
      %s318 = scalar_lea.vmem %s8, %s317
      %p319 = scmp.lt.s32.totalorder %s20, 1
      %s320 = scalar_select %p319, %s20, 1
      %s321 = smul.addr %s320, 8
      %s322 = smul.addr %s321, 8
      %s323 = scalar_lea.vmem %s0, %s322
      %p324 = scmp.lt.s32.totalorder %s20, 1
      %s325 = scalar_select %p324, %s20, 1
      %s326 = smul.addr %s325, 8
      %s327 = smul.addr %s326, 8
      %s328 = scalar_lea.vmem %s1, %s327
      %p329 = scmp.lt.s32.totalorder %s20, 1
      %s330 = scalar_select %p329, %s20, 1
      %s331 = smul.addr %s330, 8
      %s332 = smul.addr %s331, 8
      %s333 = scalar_lea.vmem %s7, %s332
      %p334 = scmp.lt.s32.totalorder %s20, 1
      %s335 = scalar_select %p334, %s20, 1
      %s336 = smul.addr %s335, 8
      %s337 = smul.addr %s336, 8
      %s338 = scalar_lea.vmem %s8, %s337
      %v339 = vld [vmem:[%s323] sm:$0xff]
      %v340 = vld [vmem:[%s323 + $0x8] sm:$0xff]
      %v341 = vld [vmem:[%s323 + $0x10] sm:$0xff]
      %v342 = vld [vmem:[%s323 + $0x18] sm:$0xff]
      %v343 = vld [vmem:[%s323 + $0x20] sm:$0xff]
      %v344 = vld [vmem:[%s323 + $0x28] sm:$0xff]
      %v345 = vld [vmem:[%s323 + $0x30] sm:$0xff]
      %v346 = vld [vmem:[%s323 + $0x38] sm:$0xff]
      %v347 = vld [vmem:[%s328] sm:$0xff]
      %v348 = vld [vmem:[%s328 + $0x8] sm:$0xff]
      %v349 = vld [vmem:[%s328 + $0x10] sm:$0xff]
      %v350 = vld [vmem:[%s328 + $0x18] sm:$0xff]
      %v351 = vld [vmem:[%s328 + $0x20] sm:$0xff]
      %v352 = vld [vmem:[%s328 + $0x28] sm:$0xff]
      %v353 = vld [vmem:[%s328 + $0x30] sm:$0xff]
      %v354 = vld [vmem:[%s328 + $0x38] sm:$0xff]
      %v355 = vld [vmem:[%s2] sm:$0x3]
      %v356 = vmul.f32 %v339, %v339
      %v357 = vmul.f32 %v340, %v340
      %v358 = vmul.f32 %v341, %v341
      %v359 = vmul.f32 %v342, %v342
      %v360 = vmul.f32 %v343, %v343
      %v361 = vmul.f32 %v344, %v344
      %v362 = vmul.f32 %v345, %v345
      %v363 = vmul.f32 %v346, %v346
      %v364 = vmul.f32 %v347, %v347
      %v365 = vmul.f32 %v348, %v348
      %v366 = vmul.f32 %v349, %v349
      %v367 = vmul.f32 %v350, %v350
      %v368 = vmul.f32 %v351, %v351
      %v369 = vmul.f32 %v352, %v352
      %v370 = vmul.f32 %v353, %v353
      %v371 = vmul.f32 %v354, %v354
      %v372 = vadd.f32 %v356, %v364
      %v373 = vadd.f32 %v357, %v365
      %v374 = vadd.f32 %v358, %v366
      %v375 = vadd.f32 %v359, %v367
      %v376 = vadd.f32 %v360, %v368
      %v377 = vadd.f32 %v361, %v369
      %v378 = vadd.f32 %v362, %v370
      %v379 = vadd.f32 %v363, %v371
      %v380 = vrsqrt.pop %v372
      %v381 = vmul.f32 %v372, %v380
      %vm382 = vcmp.eq.f32.partialorder %v372, inf
      %v383 = vsel %vm382, %v372, %v381
      %vm384 = vcmp.eq.f32.partialorder %v372, 0.0
      %v385 = vand.u32 %v372, 2147483648
      %v386 = vsel %vm384, %v385, %v383
      %v387 = vrsqrt.pop %v373
      %v388 = vmul.f32 %v373, %v387
      %vm389 = vcmp.eq.f32.partialorder %v373, inf
      %v390 = vsel %vm389, %v373, %v388
      %vm391 = vcmp.eq.f32.partialorder %v373, 0.0
      %v392 = vand.u32 %v373, 2147483648
      %v393 = vsel %vm391, %v392, %v390
      %v394 = vrsqrt.pop %v374
      %v395 = vmul.f32 %v374, %v394
      %vm396 = vcmp.eq.f32.partialorder %v374, inf
      %v397 = vsel %vm396, %v374, %v395
      %vm398 = vcmp.eq.f32.partialorder %v374, 0.0
      %v399 = vand.u32 %v374, 2147483648
      %v400 = vsel %vm398, %v399, %v397
      %v401 = vrsqrt.pop %v375
      %v402 = vmul.f32 %v375, %v401
      %vm403 = vcmp.eq.f32.partialorder %v375, inf
      %v404 = vsel %vm403, %v375, %v402
      %vm405 = vcmp.eq.f32.partialorder %v375, 0.0
      %v406 = vand.u32 %v375, 2147483648
      %v407 = vsel %vm405, %v406, %v404
      %v408 = vrsqrt.pop %v376
      %v409 = vmul.f32 %v376, %v408
      %vm410 = vcmp.eq.f32.partialorder %v376, inf
      %v411 = vsel %vm410, %v376, %v409
      %vm412 = vcmp.eq.f32.partialorder %v376, 0.0
      %v413 = vand.u32 %v376, 2147483648
      %v414 = vsel %vm412, %v413, %v411
      %v415 = vrsqrt.pop %v377
      %v416 = vmul.f32 %v377, %v415
      %vm417 = vcmp.eq.f32.partialorder %v377, inf
      %v418 = vsel %vm417, %v377, %v416
      %vm419 = vcmp.eq.f32.partialorder %v377, 0.0
      %v420 = vand.u32 %v377, 2147483648
      %v421 = vsel %vm419, %v420, %v418
      %v422 = vrsqrt.pop %v378
      %v423 = vmul.f32 %v378, %v422
      %vm424 = vcmp.eq.f32.partialorder %v378, inf
      %v425 = vsel %vm424, %v378, %v423
      %vm426 = vcmp.eq.f32.partialorder %v378, 0.0
      %v427 = vand.u32 %v378, 2147483648
      %v428 = vsel %vm426, %v427, %v425
      %v429 = vrsqrt.pop %v379
      %v430 = vmul.f32 %v379, %v429
      %vm431 = vcmp.eq.f32.partialorder %v379, inf
      %v432 = vsel %vm431, %v379, %v430
      %vm433 = vcmp.eq.f32.partialorder %v379, 0.0
      %v434 = vand.u32 %v379, 2147483648
      %v435 = vsel %vm433, %v434, %v432
      %v437 = vlaneseq
      %v438 = vshrl.u32 %v437, 7
      %v439 = vsub.s32 0, %v438
      %v440 = vrot.slane %v355, %v439
      %v441 = vlaneseq
      %v442 = vshrl.u32 %v441, 7
      %v443 = vsub.s32 1, %v442
      %v444 = vrot.slane %v355, %v443
      %v447 = vmul.f32 %v386, %v440
      %v448 = vmul.f32 %v393, %v444
      %v449 = vmul.f32 %v400, %v440
      %v450 = vmul.f32 %v407, %v444
      %v451 = vmul.f32 %v414, %v440
      %v452 = vmul.f32 %v421, %v444
      %v453 = vmul.f32 %v428, %v440
      %v454 = vmul.f32 %v435, %v444
      %v455 = vadd.f32 %v447, %v448
      %456 = vadd.xlane.f32.xlu0 %v455
      %v457 = vpop.xlane.xlu0 %456
      %v458 = vadd.f32 %v449, %v450
      %459 = vadd.xlane.f32.xlu0 %v458
      %v460 = vpop.xlane.xlu0 %459
      %v461 = vadd.f32 %v451, %v452
      %462 = vadd.xlane.f32.xlu0 %v461
      %v463 = vpop.xlane.xlu0 %462
      %v464 = vadd.f32 %v453, %v454
      %465 = vadd.xlane.f32.xlu0 %v464
      %v466 = vpop.xlane.xlu0 %465
      %v467 = vld [vmem:[%s3] sm:$0x3]
      %v472 = vlaneseq
      %v473 = vand.u32 %v472, 127
      %v474 = vlaneseq
      %v475 = vshrl.u32 %v474, 7
      %v476 = vsub.s32 %v473, %v475
      %v477 = vrot.slane %v457, %v476
      %v478 = vadd.s32 %v473, 4294967288
      %v479 = vlaneseq
      %v480 = vshrl.u32 %v479, 7
      %v481 = vsub.s32 %v478, %v480
      %v482 = vrot.slane %v460, %v481
      %vm483 = vcmask 130112
      %v484 = vsel %vm483, %v482, %v477
      %v485 = vadd.s32 %v473, 4294967280
      %v486 = vlaneseq
      %v487 = vshrl.u32 %v486, 7
      %v488 = vsub.s32 %v485, %v487
      %v489 = vrot.slane %v463, %v488
      %vm490 = vcmask 195712
      %v491 = vsel %vm490, %v489, %v484
      %v492 = vadd.s32 %v473, 4294967272
      %v493 = vlaneseq
      %v494 = vshrl.u32 %v493, 7
      %v495 = vsub.s32 %v492, %v494
      %v496 = vrot.slane %v466, %v495
      %vm497 = vcmask 261312
      %v498 = vsel %vm497, %v496, %v491
      %v500 = vmul.f32 %v467, %v498
      %vm501 = vcmask 254976
      %v502 = vsel %vm501, %v500, 0.0
      %503 = vadd.xlane.f32.xlu0 %v502
      %v504 = vpop.xlane.xlu0 %503
      %v505 = vld [vmem:[%s4] sm:$0x1]
      %v507 = vlaneseq
      %v508 = vshrl.u32 %v507, 7
      %v509 = vsub.s32 0, %v508
      %v510 = vrot.slane %v505, %v509
      %512 = vbcast.lane.b32.xlu0 %v510, 256
      %v513 = vpop.permute.xlu0 %512
      %v515 = vadd.f32 %v504, %v513
      %v516 = vmax.f32 %v515, 0.0
      %v517 = vld [vmem:[%s5] sm:$0xff]
      %v518 = vld [vmem:[%s5 + $0x8] sm:$0xff]
      %v519 = vld [vmem:[%s5 + $0x10] sm:$0xff]
      %v520 = vld [vmem:[%s5 + $0x18] sm:$0xff]
      %522 = vset.pattern.permute.xlu0 0
      %523 = vperm.xlu0 %522, %v516
      %v524 = vpop.permute.xlu0 %523
      %v525 = vlaneseq
      %v526 = vshrl.u32 %v525, 7
      %v527 = vsub.s32 %v473, %v526
      %v528 = vrot.slane %v524, %v527
      %vm529 = vcmask 1042434
      %v530 = vsel %vm529, %v528, %v528
      %vm531 = vcmask 1043459
      %v532 = vsel %vm531, %v528, %v530
      %vm533 = vcmask 1044484
      %v534 = vsel %vm533, %v528, %v532
      %vm535 = vcmask 1045509
      %v536 = vsel %vm535, %v528, %v534
      %vm537 = vcmask 1046534
      %v538 = vsel %vm537, %v528, %v536
      %vm539 = vcmask 1047559
      %v540 = vsel %vm539, %v528, %v538
      %v542 = vmul.f32 %v517, %v540
      %v543 = vmul.f32 %v518, %v540
      %v544 = vmul.f32 %v519, %v540
      %v545 = vmul.f32 %v520, %v540
      %vm546 = vcmask 15360
      %v547 = vsel %vm546, %v542, 0.0
      %548 = vadd.xlane.f32.xlu0 %v547
      %v549 = vpop.xlane.xlu0 %548
      %v550 = vsel %vm546, %v543, 0.0
      %551 = vadd.xlane.f32.xlu0 %v550
      %v552 = vpop.xlane.xlu0 %551
      %v553 = vsel %vm546, %v544, 0.0
      %554 = vadd.xlane.f32.xlu0 %v553
      %v555 = vpop.xlane.xlu0 %554
      %v556 = vsel %vm546, %v545, 0.0
      %557 = vadd.xlane.f32.xlu0 %v556
      %v558 = vpop.xlane.xlu0 %557
      %v559 = vld [vmem:[%s6] sm:$0x1]
      %v561 = vlaneseq
      %v562 = vshrl.u32 %v561, 7
      %v563 = vsub.s32 0, %v562
      %v564 = vrot.slane %v559, %v563
      %566 = vbcast.lane.b32.xlu0 %v564, 256
      %v567 = vpop.permute.xlu0 %566
      %s569 = sor.u32 256, 8
      %570 = vbcast.lane.b32.xlu0 %v564, %s569
      %v571 = vpop.permute.xlu0 %570
      %s573 = sor.u32 256, 16
      %574 = vbcast.lane.b32.xlu0 %v564, %s573
      %v575 = vpop.permute.xlu0 %574
      %s577 = sor.u32 256, 24
      %578 = vbcast.lane.b32.xlu0 %v564, %s577
      %v579 = vpop.permute.xlu0 %578
      %v584 = vadd.f32 %v549, %v567
      %v585 = vadd.f32 %v552, %v571
      %v586 = vadd.f32 %v555, %v575
      %v587 = vadd.f32 %v558, %v579
      %v588 = vxor.u32 %v584, 2147483648
      %v589 = vxor.u32 %v585, 2147483648
      %v590 = vxor.u32 %v586, 2147483648
      %v591 = vxor.u32 %v587, 2147483648
      %v592 = vmul.f32 %v588, 1.442695
      %v593 = vpow.pop %v592
      %v594 = vmul.f32 %v589, 1.442695
      %v595 = vpow.pop %v594
      %v596 = vmul.f32 %v590, 1.442695
      %v597 = vpow.pop %v596
      %v598 = vmul.f32 %v591, 1.442695
      %v599 = vpow.pop %v598
      %v600 = vadd.f32 %v593, 1.0
      %v601 = vadd.f32 %v595, 1.0
      %v602 = vadd.f32 %v597, 1.0
      %v603 = vadd.f32 %v599, 1.0
      %v604 = vrcp.pop %v600
      %v605 = vmul.f32 1.0, %v604
      %v606 = vrcp.pop %v601
      %v607 = vmul.f32 1.0, %v606
      %v608 = vrcp.pop %v602
      %v609 = vmul.f32 1.0, %v608
      %v610 = vrcp.pop %v603
      %v611 = vmul.f32 1.0, %v610
      %v612 = vsub.f32 %v605, 1.0
      %v613 = vsub.f32 %v607, 1.0
      %v614 = vsub.f32 %v609, 1.0
      %v615 = vsub.f32 %v611, 1.0
      %617 = vset.pattern.permute.xlu0 0
      %618 = vperm.xlu0 %617, %v612
      %v619 = vpop.permute.xlu0 %618
      %622 = vset.pattern.permute.xlu0 0
      %623 = vperm.xlu0 %622, %v613
      %v624 = vpop.permute.xlu0 %623
      %627 = vset.pattern.permute.xlu0 0
      %628 = vperm.xlu0 %627, %v614
      %v629 = vpop.permute.xlu0 %628
      %632 = vset.pattern.permute.xlu0 0
      %633 = vperm.xlu0 %632, %v615
      %v634 = vpop.permute.xlu0 %633
      %v636 = vmul.f32 %v440, %v619
      %v637 = vmul.f32 %v444, %v619
      %v638 = vmul.f32 %v440, %v624
      %v639 = vmul.f32 %v444, %v624
      %v640 = vmul.f32 %v440, %v629
      %v641 = vmul.f32 %v444, %v629
      %v642 = vmul.f32 %v440, %v634
      %v643 = vmul.f32 %v444, %v634
      %v644 = vadd.f32 %v636, 1.0
      %v645 = vadd.f32 %v637, 1.0
      %v646 = vadd.f32 %v638, 1.0
      %v647 = vadd.f32 %v639, 1.0
      %v648 = vadd.f32 %v640, 1.0
      %v649 = vadd.f32 %v641, 1.0
      %v650 = vadd.f32 %v642, 1.0
      %v651 = vadd.f32 %v643, 1.0
      %v652 = vmul.f32 %v339, %v644
      %v653 = vmul.f32 %v340, %v645
      %v654 = vmul.f32 %v341, %v646
      %v655 = vmul.f32 %v342, %v647
      %v656 = vmul.f32 %v343, %v648
      %v657 = vmul.f32 %v344, %v649
      %v658 = vmul.f32 %v345, %v650
      %v659 = vmul.f32 %v346, %v651
      %660 = vst [vmem:[%s333] sm:$0xff] %v652
      %661 = vst [vmem:[%s333 + $0x8] sm:$0xff] %v653
      %662 = vst [vmem:[%s333 + $0x10] sm:$0xff] %v654
      %663 = vst [vmem:[%s333 + $0x18] sm:$0xff] %v655
      %664 = vst [vmem:[%s333 + $0x20] sm:$0xff] %v656
      %665 = vst [vmem:[%s333 + $0x28] sm:$0xff] %v657
      %666 = vst [vmem:[%s333 + $0x30] sm:$0xff] %v658
      %667 = vst [vmem:[%s333 + $0x38] sm:$0xff] %v659
      %v668 = vmul.f32 %v347, %v644
      %v669 = vmul.f32 %v348, %v645
      %v670 = vmul.f32 %v349, %v646
      %v671 = vmul.f32 %v350, %v647
      %v672 = vmul.f32 %v351, %v648
      %v673 = vmul.f32 %v352, %v649
      %v674 = vmul.f32 %v353, %v650
      %v675 = vmul.f32 %v354, %v651
      %676 = vst [vmem:[%s338] sm:$0xff] %v668
      %677 = vst [vmem:[%s338 + $0x8] sm:$0xff] %v669
      %678 = vst [vmem:[%s338 + $0x10] sm:$0xff] %v670
      %679 = vst [vmem:[%s338 + $0x18] sm:$0xff] %v671
      %680 = vst [vmem:[%s338 + $0x20] sm:$0xff] %v672
      %681 = vst [vmem:[%s338 + $0x28] sm:$0xff] %v673
      %682 = vst [vmem:[%s338 + $0x30] sm:$0xff] %v674
      %683 = vst [vmem:[%s338 + $0x38] sm:$0xff] %v675
      %p684 = scmp.lt.s32.totalorder %s20, 1
      %s685 = scalar_select %p684, %s20, 1
      %s686 = smul.addr %s685, 8
      %s687 = smul.addr %s686, 8
      %s688 = scalar_lea.vmem %s7, %s687
      %p689 = scmp.lt.s32.totalorder %s20, 1
      %s690 = scalar_select %p689, %s20, 1
      %s691 = smul.addr %s690, 8
      %s692 = smul.addr %s691, 8
      %s693 = scalar_lea.vmem %s8, %s692
      // Predicated region
      $region49: #{fft_layer.1} parent=47 // pred_check
        %p694 = pneg %p195
      $region50: #{fft_layer.1} parent=47 // pred_check_branch
        %696 = sbr.rel (%p694) target = $region52
      $region51: #{fft_layer.1} parent=47 // pred_region
        _
      $region52: #{fft_layer.1} parent=47 // pred_fallthru
        _
      // Predicated region
      $region53: #{fft_layer.1} parent=47 // pred_check
        %p697 = pneg %p221
      $region54: #{fft_layer.1} parent=47 // pred_check_branch
        %699 = sbr.rel (%p697) target = $region56
      $region55: #{fft_layer.1} parent=47 // pred_region
        _
      $region56: #{fft_layer.1} parent=47 // pred_fallthru
        _
    $region48: #{fft_layer.1} parent=5 // pred_fallthru
      _
    %p700 = scmp.le.s32.totalorder 2, %s15
    // Predicated region
    $region57: #{fft_layer.1} parent=5 // pred_check
      %p701 = pneg %p700
    $region58: #{fft_layer.1} parent=5 // pred_check_branch
      %703 = sbr.rel (%p701) target = $region60
    $region59: #{fft_layer.1} parent=5 // pred_region
      %s704 = ssub.s32 %s15, 2
      // Predicated region
      $region61: #{fft_layer.1} parent=59 // pred_check
        %p705 = pneg %p201
      $region62: #{fft_layer.1} parent=59 // pred_check_branch
        %707 = sbr.rel (%p705) target = $region64
      $region63: #{fft_layer.1} parent=59 // pred_region
        %p708 = scmp.lt.s32.totalorder %s21, 1
        %s709 = scalar_select %p708, %s21, 1
        %s710 = smul.addr %s709, 8
        %s711 = smul.addr %s710, 8
        %s712 = scalar_lea.vmem %s7, %s711
      $region64: #{fft_layer.1} parent=59 // pred_fallthru
        _
      // Predicated region
      $region65: #{fft_layer.1} parent=59 // pred_check
        %p713 = pneg %p227
      $region66: #{fft_layer.1} parent=59 // pred_check_branch
        %715 = sbr.rel (%p713) target = $region68
      $region67: #{fft_layer.1} parent=59 // pred_region
        %p716 = scmp.lt.s32.totalorder %s21, 1
        %s717 = scalar_select %p716, %s21, 1
        %s718 = smul.addr %s717, 8
        %s719 = smul.addr %s718, 8
        %s720 = scalar_lea.vmem %s8, %s719
      $region68: #{fft_layer.1} parent=59 // pred_fallthru
        _
    $region60: #{fft_layer.1} parent=5 // pred_fallthru
      _
  $region6: #{fft_layer.1} parent=0 // loop_footer
    %s19 = sadd.s32 1, %s15
  $region7: #{fft_layer.1} parent=0 // loop_footer_branch
    %14 = sbr.rel target = $region3
  $region8: #{fft_layer.1} parent=0 // loop_exit
    _

// kernel: custom-call
$region0: #{custom-call}
  %s0 = inlined_call_operand.vmem [shape: f32[2,32,16,16], index: 0, kind: input, shape index: {}]
  %s1 = inlined_call_operand.vmem [shape: f32[2,32,16,16], index: 1, kind: input, shape index: {}]
  %s2 = inlined_call_operand.hbm [shape: c64[2,32,16,16], index: 2, kind: output, shape index: {}]
  %s3 = scalar_lea.hbm %s2, 8192
  $region1: #{custom-call} parent=0
    #allocation0 [shape = 's32[1]{0}', space=sflag, size = 0x4, scoped, tag = 'scoped memory for custom-call']
    %4 = vsyncpa [#allocation0], 0
    %s5 = sshll.u32 %s0, 4
    %s6 = int_to_ptr.vmem [resolvable:$true] %s5
    %8 = dma.vmem_to_hbm [thread:$0]  %s6, 8192, %s2, [#allocation0]
    %9 = dma.done [#allocation0], 8192
    %10 = vsyncpa [#allocation0], 1
  $region2: #{custom-call} parent=0
    #allocation1 [shape = 's32[1]{0}', space=sflag, size = 0x4, scoped, tag = 'scoped memory for custom-call']
    %11 = vsyncpa [#allocation1], 0
    %s12 = sshll.u32 %s1, 4
    %s13 = int_to_ptr.vmem [resolvable:$true] %s12
    %15 = dma.vmem_to_hbm [thread:$0]  %s13, 8192, %s3, [#allocation1]
    %16 = dma.done [#allocation1], 8192
    %17 = vsyncpa [#allocation1], 1

</llo_original>
